<compile_context>
chip_gen: v7x
topology: tpu7x:2x2x1
jax: 0.10.0
libtpu: 0.0.40
codegen_flags: <defaults>
</compile_context>

<pallas_src>
import functools

import jax
import jax.numpy as jnp
from jax.experimental import pallas as pl
from jax.experimental.pallas import tpu as pltpu


def _round_up(x, m):
    return ((x + m - 1) // m) * m


def _ensemble_kernel(cm_ref, x_ref, w1_ref, whead_ref, consts_ref, out_ref,
                     *, n_models, mh, head_blk):
    f32 = jnp.float32
    cm = cm_ref[...].astype(f32)                       # [B, 2] = charge | mult
    charge = cm[:, 0:1]
    mult = cm[:, 1:2]

    # charge' = 0.5 * stack([c - mult + 1, c + mult - 1], -1)   -> [B, 2]
    cp = 0.5 * jnp.concatenate([charge - mult + 1.0, charge + mult - 1.0], axis=-1)

    consts = consts_ref[...]                           # [4, n_head] f32
    b1 = consts[0:1, :mh]                              # [1, M*H]
    b_head = consts[1:2, :]                            # [1, n_head]
    w1c0 = consts[2:3, :mh]                            # [1, M*H]
    w1c1 = consts[3:4, :mh]                            # [1, M*H]

    cdt = w1_ref.dtype                                 # MXU compute dtype

    # Fused layer 1: one lane-dense MXU matmul for x; the 2-wide charge term is
    # two VPU rank-1 updates (no second MXU push).  f32 accumulation.
    pre = jnp.dot(x_ref[...], w1_ref[...], preferred_element_type=f32)
    pre = pre + cp[:, 0:1] * w1c0 + cp[:, 1:2] * w1c1 + b1
    h = jnp.tanh(pre)                                  # [B, M*H] f32 (EUP)

    # Fused heads: single block-diagonal matmul -> [B, n_head] (f32 acc).
    out_all = jnp.dot(h.astype(cdt), whead_ref[...],
                      preferred_element_type=f32) + b_head

    # Per-model head blocks are whole-vreg (128-lane) slices:
    # col 0 = energy, cols 1..A = charges, rest = zero pad.
    outs = [out_all[:, m * head_blk:(m + 1) * head_blk] for m in range(n_models)]

    # Two-pass mean / unbiased std over the model axis (all in vregs, f32).
    s = outs[0]
    for m in range(1, n_models):
        s = s + outs[m]
    mean = s * (1.0 / n_models)
    sq = (outs[0] - mean) ** 2
    for m in range(1, n_models):
        sq = sq + (outs[m] - mean) ** 2
    if n_models > 1:
        std = jnp.sqrt(sq * (1.0 / (n_models - 1)))
    else:
        # NOTE: torch.std (ddof=1) of a single sample is NaN; matched on
        # purpose — do not "fix" without changing the reference semantics.
        std = jnp.full_like(mean, jnp.nan)

    # Output slab: [cp_block(128) | mean_block(128) | std_block(128)].
    # Every piece is 128-lane aligned -> one unmasked lane-dense store.
    cp_block = jnp.pad(cp, ((0, 0), (0, head_blk - 2)))
    out_ref[...] = jnp.concatenate([cp_block, mean, std], axis=-1)


def pack_params(params, compute_dtype=jnp.bfloat16):
    """One-time, per-parameter-set packing into lane-dense kernel operands.

    compute_dtype=bfloat16 is fine on v5e/v6e/v7x: the MXU is bf16-native on
    all of them; tanh/statistics run in f32 regardless.
    """
    M, D, H = params['w1x'].shape
    A = params['w3'].shape[-1]
    MH = M * H
    head_blk = 128                                      # whole-vreg head blocks
    assert 1 + A <= head_blk
    n_head = M * head_blk

    # Layer 1: concat over models along the hidden axis -> [D, M*H].
    w1 = jnp.transpose(params['w1x'], (1, 0, 2)).reshape(D, MH)
    w1c = jnp.transpose(params['w1c'], (1, 0, 2)).reshape(2, MH)
    b1 = params['b1'].reshape(1, MH)

    # Heads: per-model [H, 1+A] (energy | charges), zero-padded to head_blk
    # columns, assembled block-diagonally with one einsum -> [M*H, n_head].
    head_w = jnp.concatenate([params['w2'], params['w3']], axis=-1)      # [M,H,1+A]
    head_b = jnp.concatenate([params['b2'], params['b3']], axis=-1)      # [M,1,1+A]
    head_w = jnp.pad(head_w, ((0, 0), (0, 0), (0, head_blk - (1 + A))))  # [M,H,blk]
    head_b = jnp.pad(head_b, ((0, 0), (0, 0), (0, head_blk - (1 + A))))  # [M,1,blk]
    eye = jnp.eye(M, dtype=head_w.dtype)
    w_head = jnp.einsum('mn,mhk->mhnk', eye, head_w).reshape(MH, n_head)
    b_head = head_b.reshape(1, n_head)

    # All small f32 constants in ONE array (one DMA): b1 | b_head | w1c rows.
    consts = jnp.zeros((4, n_head), jnp.float32)
    consts = consts.at[0, :MH].set(b1[0].astype(jnp.float32))
    consts = consts.at[1, :].set(b_head[0].astype(jnp.float32))
    consts = consts.at[2, :MH].set(w1c[0].astype(jnp.float32))
    consts = consts.at[3, :MH].set(w1c[1].astype(jnp.float32))

    return {
        'w1': w1.astype(compute_dtype),
        'w_head': w_head.astype(compute_dtype),
        'consts': consts,
        'meta': dict(M=M, D=D, H=H, A=A, MH=MH, head_blk=head_blk,
                     n_head=n_head, compute_dtype=compute_dtype),
    }


def ensemble_forward(data, packed, *, block_b=256):
    """Pallas-TPU EnsembleCalculator forward. Returns (new_data, result)."""
    meta = packed['meta']
    M, D, A = meta['M'], meta['D'], meta['A']
    MH, head_blk, n_head = meta['MH'], meta['head_blk'], meta['n_head']
    cdt = meta['compute_dtype']

    charge = data['charge'].astype(jnp.float32)
    mult = data['mult'].astype(jnp.float32)
    x = data['x']
    B = x.shape[0]

    cm = jnp.concatenate([charge, mult], axis=-1)        # [B, 2]
    x_c = x.astype(cdt)

    block_b = _round_up(max(8, block_b), 8)
    if B <= block_b:                                     # single block, grid=()
        bb = Bp = _round_up(B, 8)
        grid = None
    else:                                                # parallel grid over B
        bb = block_b
        Bp = _round_up(B, bb)
        grid = (Bp // bb,)
    if Bp != B:
        cm = jnp.pad(cm, ((0, Bp - B), (0, 0)))
        x_c = jnp.pad(x_c, ((0, Bp - B), (0, 0)))

    out_width = 3 * head_blk
    kernel = functools.partial(_ensemble_kernel, n_models=M, mh=MH,
                               head_blk=head_blk)

    itemsize = int(jnp.dtype(cdt).itemsize)
    cost = pl.CostEstimate(
        flops=int(2 * Bp * (D * MH + MH * n_head) + 10 * Bp * MH),
        transcendentals=int(Bp * MH),
        bytes_accessed=int(Bp * 2 * 4 + Bp * D * itemsize
                           + D * MH * itemsize + MH * n_head * itemsize
                           + 4 * n_head * 4 + Bp * out_width * 4))

    args = (cm, x_c, packed['w1'], packed['w_head'], packed['consts'])
    if grid is None:
        vmem = pltpu.MemorySpace.VMEM
        slab = pl.pallas_call(
            kernel,
            out_shape=jax.ShapeDtypeStruct((Bp, out_width), jnp.float32),
            in_specs=[pl.BlockSpec(memory_space=vmem) for _ in range(5)],
            out_specs=pl.BlockSpec(memory_space=vmem),
            cost_estimate=cost,
        )(*args)
    else:
        slab = pl.pallas_call(
            kernel,
            out_shape=jax.ShapeDtypeStruct((Bp, out_width), jnp.float32),
            grid=grid,
            in_specs=[
                pl.BlockSpec((bb, 2), lambda i: (i, 0)),
                pl.BlockSpec((bb, D), lambda i: (i, 0)),
                pl.BlockSpec((D, MH), lambda i: (0, 0)),
                pl.BlockSpec((MH, n_head), lambda i: (0, 0)),
                pl.BlockSpec((4, n_head), lambda i: (0, 0)),
            ],
            out_specs=pl.BlockSpec((bb, out_width), lambda i: (i, 0)),
            compiler_params=pltpu.CompilerParams(
                dimension_semantics=("parallel",)),
            cost_estimate=cost,
        )(*args)

    slab = slab[:B]
    # Mimic the in-place mutation of data['charge'] in the torch module.
    new_data = dict(data)
    new_data['charge'] = slab[:, 0:2]
    result = {
        'energy': slab[:, head_blk + 0],
        'energy_std': slab[:, 2 * head_blk + 0],
        'charges': slab[:, head_blk + 1:head_blk + 1 + A],
        'charges_std': slab[:, 2 * head_blk + 1:2 * head_blk + 1 + A],
    }
    return new_data, result


def reference_forward(data, params):
    """Plain-JAX reference of the same forward (torch semantics, f32)."""
    charge, mult, x = data['charge'], data['mult'], data['x']
    cp = 0.5 * jnp.concatenate([charge - mult + 1.0, charge + mult - 1.0], axis=-1)
    dot = functools.partial(jnp.dot, precision=jax.lax.Precision.HIGHEST)
    M = params['w1x'].shape[0]
    es, qs = [], []
    for i in range(M):
        h = jnp.tanh(dot(x, params['w1x'][i]) + dot(cp, params['w1c'][i]) + params['b1'][i])
        es.append(dot(h, params['w2'][i]) + params['b2'][i])
        qs.append(dot(h, params['w3'][i]) + params['b3'][i])
    e = jnp.stack(es, axis=0)   # [M, B, 1]
    q = jnp.stack(qs, axis=0)   # [M, B, A]
    result = {
        'energy': e.mean(axis=0)[:, 0],
        'energy_std': e.std(axis=0, ddof=1)[:, 0],
        'charges': q.mean(axis=0),
        'charges_std': q.std(axis=0, ddof=1),
    }
    return cp, result


def _check(result, ref_result, rtol, atol):
    for k in ('energy', 'energy_std', 'charges', 'charges_std'):
        assert result[k].shape == ref_result[k].shape, k
        assert jnp.allclose(result[k], ref_result[k], rtol=rtol, atol=atol), k


if __name__ == "__main__":
    # TODO(synk): the torch module wraps arbitrary member models and takes
    # o[k][-1] of each; members are synthesized here as fixed 2-layer MLPs
    # whose final output plays the role of that last trajectory entry.
    M, B, D, H, A = 4, 8, 32, 32, 16   # models, molecules, features, hidden, atoms

    key = jax.random.PRNGKey(0)
    keys = jax.random.split(key, 9)
    params = {
        'w1x': jax.random.normal(keys[0], (M, D, H), jnp.float32) / jnp.sqrt(D),
        'w1c': jax.random.normal(keys[1], (M, 2, H), jnp.float32) / jnp.sqrt(2.0),
        'b1':  0.1 * jax.random.normal(keys[2], (M, 1, H), jnp.float32),
        'w2':  jax.random.normal(keys[3], (M, H, 1), jnp.float32) / jnp.sqrt(H),
        'b2':  0.1 * jax.random.normal(keys[4], (M, 1, 1), jnp.float32),
        'w3':  jax.random.normal(keys[5], (M, H, A), jnp.float32) / jnp.sqrt(H),
        'b3':  0.1 * jax.random.normal(keys[6], (M, 1, A), jnp.float32),
    }

    x = jax.random.normal(keys[7], (B, D), jnp.float32)
    charge = (jnp.arange(B, dtype=jnp.float32) % 3.0 - 1.0).reshape(B, 1)  # -1, 0, +1
    mult = (jnp.arange(B, dtype=jnp.float32) % 2.0 + 1.0).reshape(B, 1)    # 1 or 2
    data = {'x': x, 'charge': charge, 'mult': mult}

    ref_charge, ref_result = reference_forward(data, params)

    # Parameter packing happens ONCE per parameter set (hoisted out of forward).
    packed_f32 = pack_params(params, compute_dtype=jnp.float32)
    packed_bf16 = pack_params(params, compute_dtype=jnp.bfloat16)

    # Full-precision path, single block (grid=()): strict tolerance.
    new_data32, result32 = ensemble_forward(data, packed_f32)
    jax.block_until_ready(result32)
    assert jnp.allclose(new_data32['charge'], ref_charge, rtol=5e-3, atol=5e-3)
    _check(result32, ref_result, 5e-3, 5e-3)

    # bf16 MXU fast path (valid on v5e/v6e/v7x): f32 accumulation/tanh/stats.
    new_data16, result16 = ensemble_forward(data, packed_bf16)
    jax.block_until_ready(result16)
    assert jnp.allclose(new_data16['charge'], ref_charge, rtol=5e-3, atol=5e-3)
    _check(result16, ref_result, 3e-2, 3e-2)

    # Batched path with a parallel grid over B (exercises the v7x dual-TC path).
    B2 = 24
    x2 = jax.random.normal(keys[8], (B2, D), jnp.float32)
    charge2 = (jnp.arange(B2, dtype=jnp.float32) % 3.0 - 1.0).reshape(B2, 1)
    mult2 = (jnp.arange(B2, dtype=jnp.float32) % 2.0 + 1.0).reshape(B2, 1)
    data2 = {'x': x2, 'charge': charge2, 'mult': mult2}
    ref_charge2, ref_result2 = reference_forward(data2, params)
    new_data2, result2 = ensemble_forward(data2, packed_f32, block_b=8)
    jax.block_until_ready(result2)
    assert jnp.allclose(new_data2['charge'], ref_charge2, rtol=5e-3, atol=5e-3)
    _check(result2, ref_result2, 5e-3, 5e-3)

    print("KERNEL_OK")
</pallas_src>

<mosaic_0001>
module attributes {stable_mosaic.version = 11 : i64} {
  func.func @_ensemble_kernel(%arg0: memref<8x2xf32, #tpu.memory_space<vmem>>, %arg1: memref<8x32xf32, #tpu.memory_space<vmem>>, %arg2: memref<32x128xf32, #tpu.memory_space<vmem>>, %arg3: memref<128x512xf32, #tpu.memory_space<vmem>>, %arg4: memref<4x512xf32, #tpu.memory_space<vmem>>, %arg5: memref<8x384xf32, #tpu.memory_space<vmem>>) attributes {dimension_semantics = [], scalar_prefetch = 0 : i64, scratch_operands = 0 : i64, tpu.core_type = #tpu.core_type<tc>} {
    %c0 = arith.constant 0 : index
    %c0_0 = arith.constant 0 : index
    %0 = vector.load %arg0[%c0, %c0_0] : memref<8x2xf32, #tpu.memory_space<vmem>>, vector<8x2xf32>
    %1 = vector.extract_strided_slice %0 {offsets = [0, 0], sizes = [8, 1], strides = [1, 1]} : vector<8x2xf32> to vector<8x1xf32>
    %2 = vector.extract_strided_slice %0 {offsets = [0, 1], sizes = [8, 1], strides = [1, 1]} : vector<8x2xf32> to vector<8x1xf32>
    %3 = arith.subf %1, %2 : vector<8x1xf32>
    %cst = arith.constant 1.000000e+00 : f32
    %4 = vector.broadcast %cst : f32 to vector<8x1xf32>
    %5 = arith.addf %3, %4 : vector<8x1xf32>
    %6 = arith.addf %1, %2 : vector<8x1xf32>
    %cst_1 = arith.constant 1.000000e+00 : f32
    %7 = vector.broadcast %cst_1 : f32 to vector<8x1xf32>
    %8 = arith.subf %6, %7 : vector<8x1xf32>
    %9 = tpu.concatenate %5, %8 in 1 : vector<8x1xf32>, vector<8x1xf32> -> vector<8x2xf32>
    %cst_2 = arith.constant 5.000000e-01 : f32
    %10 = vector.broadcast %cst_2 : f32 to vector<8x2xf32>
    %11 = arith.mulf %10, %9 : vector<8x2xf32>
    %c0_3 = arith.constant 0 : index
    %c0_4 = arith.constant 0 : index
    %12 = vector.load %arg4[%c0_3, %c0_4] : memref<4x512xf32, #tpu.memory_space<vmem>>, vector<4x512xf32>
    %13 = vector.extract_strided_slice %12 {offsets = [0, 0], sizes = [1, 128], strides = [1, 1]} : vector<4x512xf32> to vector<1x128xf32>
    %14 = vector.extract_strided_slice %12 {offsets = [1, 0], sizes = [1, 512], strides = [1, 1]} : vector<4x512xf32> to vector<1x512xf32>
    %15 = vector.extract_strided_slice %12 {offsets = [2, 0], sizes = [1, 128], strides = [1, 1]} : vector<4x512xf32> to vector<1x128xf32>
    %16 = vector.extract_strided_slice %12 {offsets = [3, 0], sizes = [1, 128], strides = [1, 1]} : vector<4x512xf32> to vector<1x128xf32>
    %c0_5 = arith.constant 0 : index
    %c0_6 = arith.constant 0 : index
    %17 = vector.load %arg1[%c0_5, %c0_6] : memref<8x32xf32, #tpu.memory_space<vmem>>, vector<8x32xf32>
    %c0_7 = arith.constant 0 : index
    %c0_8 = arith.constant 0 : index
    %18 = vector.load %arg2[%c0_7, %c0_8] : memref<32x128xf32, #tpu.memory_space<vmem>>, vector<32x128xf32>
    %cst_9 = arith.constant dense<0.000000e+00> : vector<8x128xf32>
    %19 = tpu.matmul %17, %18, %cst_9 {dimension_numbers = #tpu.dot_dimension_numbers<[1], [0], [0], [1], [0, 0, 1, 1], [], []>} : vector<8x32xf32>, vector<32x128xf32>, vector<8x128xf32> -> vector<8x128xf32>
    %20 = vector.extract_strided_slice %11 {offsets = [0, 0], sizes = [8, 1], strides = [1, 1]} : vector<8x2xf32> to vector<8x1xf32>
    %21 = vector.broadcast %20 : vector<8x1xf32> to vector<8x128xf32>
    %22 = vector.broadcast %15 : vector<1x128xf32> to vector<8x128xf32>
    %23 = arith.mulf %21, %22 : vector<8x128xf32>
    %24 = arith.addf %19, %23 : vector<8x128xf32>
    %25 = vector.extract_strided_slice %11 {offsets = [0, 1], sizes = [8, 1], strides = [1, 1]} : vector<8x2xf32> to vector<8x1xf32>
    %26 = vector.broadcast %25 : vector<8x1xf32> to vector<8x128xf32>
    %27 = vector.broadcast %16 : vector<1x128xf32> to vector<8x128xf32>
    %28 = arith.mulf %26, %27 : vector<8x128xf32>
    %29 = arith.addf %24, %28 : vector<8x128xf32>
    %30 = vector.broadcast %13 : vector<1x128xf32> to vector<8x128xf32>
    %31 = arith.addf %29, %30 : vector<8x128xf32>
    %32 = math.tanh %31 : vector<8x128xf32>
    %c0_10 = arith.constant 0 : index
    %c0_11 = arith.constant 0 : index
    %33 = vector.load %arg3[%c0_10, %c0_11] : memref<128x512xf32, #tpu.memory_space<vmem>>, vector<128x512xf32>
    %cst_12 = arith.constant dense<0.000000e+00> : vector<8x512xf32>
    %34 = tpu.matmul %32, %33, %cst_12 {dimension_numbers = #tpu.dot_dimension_numbers<[1], [0], [0], [1], [0, 0, 1, 1], [], []>} : vector<8x128xf32>, vector<128x512xf32>, vector<8x512xf32> -> vector<8x512xf32>
    %35 = vector.broadcast %14 : vector<1x512xf32> to vector<8x512xf32>
    %36 = arith.addf %34, %35 : vector<8x512xf32>
    %37 = vector.extract_strided_slice %36 {offsets = [0, 0], sizes = [8, 128], strides = [1, 1]} : vector<8x512xf32> to vector<8x128xf32>
    %38 = vector.extract_strided_slice %36 {offsets = [0, 128], sizes = [8, 128], strides = [1, 1]} : vector<8x512xf32> to vector<8x128xf32>
    %39 = vector.extract_strided_slice %36 {offsets = [0, 256], sizes = [8, 128], strides = [1, 1]} : vector<8x512xf32> to vector<8x128xf32>
    %40 = vector.extract_strided_slice %36 {offsets = [0, 384], sizes = [8, 128], strides = [1, 1]} : vector<8x512xf32> to vector<8x128xf32>
    %41 = arith.addf %37, %38 : vector<8x128xf32>
    %42 = arith.addf %41, %39 : vector<8x128xf32>
    %43 = arith.addf %42, %40 : vector<8x128xf32>
    %cst_13 = arith.constant 2.500000e-01 : f32
    %44 = vector.broadcast %cst_13 : f32 to vector<8x128xf32>
    %45 = arith.mulf %43, %44 : vector<8x128xf32>
    %46 = arith.subf %37, %45 : vector<8x128xf32>
    %47 = arith.mulf %46, %46 : vector<8x128xf32>
    %48 = arith.subf %38, %45 : vector<8x128xf32>
    %49 = arith.mulf %48, %48 : vector<8x128xf32>
    %50 = arith.addf %47, %49 : vector<8x128xf32>
    %51 = arith.subf %39, %45 : vector<8x128xf32>
    %52 = arith.mulf %51, %51 : vector<8x128xf32>
    %53 = arith.addf %50, %52 : vector<8x128xf32>
    %54 = arith.subf %40, %45 : vector<8x128xf32>
    %55 = arith.mulf %54, %54 : vector<8x128xf32>
    %56 = arith.addf %53, %55 : vector<8x128xf32>
    %cst_14 = arith.constant 0.333333343 : f32
    %57 = vector.broadcast %cst_14 : f32 to vector<8x128xf32>
    %58 = arith.mulf %56, %57 : vector<8x128xf32>
    %59 = math.sqrt %58 : vector<8x128xf32>
    %c0_i32 = arith.constant 0 : i32
    %60 = arith.sitofp %c0_i32 : i32 to f32
    %61 = vector.broadcast %60 : f32 to vector<8x126xf32>
    %62 = tpu.concatenate %11, %61 in 1 : vector<8x2xf32>, vector<8x126xf32> -> vector<8x128xf32>
    %63 = tpu.concatenate %62, %45, %59 in 1 : vector<8x128xf32>, vector<8x128xf32>, vector<8x128xf32> -> vector<8x384xf32>
    %c0_15 = arith.constant 0 : index
    %c0_16 = arith.constant 0 : index
    %64 = vector.load %arg5[%c0_15, %c0_16] : memref<8x384xf32, #tpu.memory_space<vmem>>, vector<8x384xf32>
    tpu.vector_store %arg5[%c0_15, %c0_16], %63 {strides = array<i32>} : memref<8x384xf32, #tpu.memory_space<vmem>>, vector<8x384xf32>,
    return
  }
}

</mosaic_0001>

<llo_original>
// kernel: tpu_custom_call.1
$region0: #{tpu_custom_call.1}
  #allocation0 [shape = 'u32[]', space=smem, size = 0x4, offset = 0x4, fixed_abs, tag = 'smem constant byte address 0x4 - core index']
  #allocation1 [shape = 'u32[144,128]{1,0:T(1,128)}', space=vmem, size = 0x12000, scoped, tag = 'internal scratch']
  %s0 = inlined_call_operand.vmem [shape: f32[8,2], index: 0, kind: input, shape index: {}]
  %s1 = inlined_call_operand.vmem [shape: f32[8,32], index: 1, kind: input, shape index: {}]
  %s2 = inlined_call_operand.hbm [shape: f32[32,128], index: 2, kind: input, shape index: {}]
  %s3 = inlined_call_operand.hbm [shape: f32[128,512], index: 3, kind: input, shape index: {}]
  %s4 = inlined_call_operand.vmem [shape: f32[4,512], index: 4, kind: input, shape index: {}]
  %s5 = inlined_call_operand.hbm [shape: f32[8,384], index: 5, kind: output, shape index: {}]
  %s6 = sld [smem:[#allocation0]]
  $region38: #{tpu_custom_call.1} parent=0
    _
  %s8 = ssub.s32 1, %s6
  %s9 = scalar_select 0, %s8, %s6
  $region1: #{tpu_custom_call.1} parent=0
    #allocation2 [shape = 'u8[16384]{0}', space=vmem, size = 0x4000, scoped, tag = 'input window, operand 2, single buffered']
    #allocation3 [shape = 's32[1]{0}', space=sflag, size = 0x4, scoped, tag = 'scoped memory for tpu_custom_call.1']
    #allocation4 [shape = 's32[1]{0}', space=sflag, size = 0x4, scoped, tag = 'scoped memory for tpu_custom_call.1']
    #allocation5 [shape = 'u8[262144]{0}', space=vmem, size = 0x40000, scoped, tag = 'input window, operand 3, single buffered']
    #allocation6 [shape = 's32[1]{0}', space=sflag, size = 0x4, scoped, tag = 'scoped memory for tpu_custom_call.1']
    #allocation7 [shape = 'u8[12288]{0}', space=vmem, size = 0x3000, scoped, tag = 'output window, operand 0, single buffered']
    %10 = vsyncpa [#allocation3], 0
    %11 = vsyncpa [#allocation6], 0
    %12 = vsyncpa [#allocation4], 0
    // Predicated region
    $region2: #{tpu_custom_call.1} parent=1 // pred_check
      _
    $region3: #{tpu_custom_call.1} parent=1 // pred_check_branch
      %14 = sbr.rel (0) target = $region5
    $region4: #{tpu_custom_call.1} parent=1 // pred_region
      _
    $region5: #{tpu_custom_call.1} parent=1 // pred_fallthru
      _
    // Predicated region
    $region6: #{tpu_custom_call.1} parent=1 // pred_check
      _
    $region7: #{tpu_custom_call.1} parent=1 // pred_check_branch
      %16 = sbr.rel (0) target = $region9
    $region8: #{tpu_custom_call.1} parent=1 // pred_region
      _
    $region9: #{tpu_custom_call.1} parent=1 // pred_fallthru
      _
    // Predicated region
    $region10: #{tpu_custom_call.1} parent=1 // pred_check
      _
    $region11: #{tpu_custom_call.1} parent=1 // pred_check_branch
      %18 = sbr.rel (0) target = $region13
    $region12: #{tpu_custom_call.1} parent=1 // pred_region
      %s20 = ssub.s32 512, 512
      %21 = vsyncadd [#allocation3], %s20
      %s22 = sshll.u32 [#allocation2], 4
      %s23 = int_to_ptr.vmem [resolvable:$true] %s22
      %28 = dma.hbm_to_vmem [thread:$0]  %s2, 512, %s23, [#allocation3], 128, 128, 8
    $region13: #{tpu_custom_call.1} parent=1 // pred_fallthru
      _
    // Predicated region
    $region14: #{tpu_custom_call.1} parent=1 // pred_check
      _
    $region15: #{tpu_custom_call.1} parent=1 // pred_check_branch
      %30 = sbr.rel (0) target = $region17
    $region16: #{tpu_custom_call.1} parent=1 // pred_region
      %s32 = ssub.s32 8192, 8192
      %33 = vsyncadd [#allocation6], %s32
      %s34 = sshll.u32 [#allocation5], 4
      %s35 = int_to_ptr.vmem [resolvable:$true] %s34
      %40 = dma.hbm_to_vmem [thread:$0]  %s3, 8192, %s35, [#allocation6], 512, 512, 32
    $region17: #{tpu_custom_call.1} parent=1 // pred_fallthru
      _
    // Predicated region
    $region18: #{tpu_custom_call.1} parent=1 // pred_check
      _
    $region19: #{tpu_custom_call.1} parent=1 // pred_check_branch
      %42 = sbr.rel (0) target = $region21
    $region20: #{tpu_custom_call.1} parent=1 // pred_region
      _
    $region21: #{tpu_custom_call.1} parent=1 // pred_fallthru
      _
    // Predicated region
    $region22: #{tpu_custom_call.1} parent=1 // pred_check
      _
    $region23: #{tpu_custom_call.1} parent=1 // pred_check_branch
      %44 = sbr.rel (0) target = $region25
    $region24: #{tpu_custom_call.1} parent=1 // pred_region
      %45 = dma.done [#allocation3], 512
    $region25: #{tpu_custom_call.1} parent=1 // pred_fallthru
      _
    // Predicated region
    $region26: #{tpu_custom_call.1} parent=1 // pred_check
      _
    $region27: #{tpu_custom_call.1} parent=1 // pred_check_branch
      %47 = sbr.rel (0) target = $region29
    $region28: #{tpu_custom_call.1} parent=1 // pred_region
      %48 = dma.done [#allocation6], 8192
    $region29: #{tpu_custom_call.1} parent=1 // pred_fallthru
      _
    %v49 = vld [vmem:[%s0] sm:$0xff]
    %51 = vrot.lane.b32.xlu0 %v49, 127
    %v52 = vpop.permute.xlu0 %51
    %v54 = vsub.f32 %v49, %v52
    %v55 = vadd.f32 %v54, 1.0
    %v56 = vadd.f32 %v49, %v52
    %v57 = vsub.f32 %v56, 1.0
    %59 = vrot.lane.b32.xlu0 %v57, 1
    %v60 = vpop.permute.xlu0 %59
    %vm62 = vcmask 7168
    %v63 = vsel %vm62, %v55, %v60
    %v64 = vmul.f32 %v63, 0.5
    %v65 = vld [vmem:[%s4] sm:$0xff]
    %v66 = vld [vmem:[%s4 + $0x8] sm:$0xff]
    %v67 = vld [vmem:[%s1] sm:$0xff]
    %v68 = vld [vmem:[#allocation2] sm:$0xff]
    %v69 = vld [vmem:[#allocation2 + $0x8] sm:$0xff]
    %v70 = vld [vmem:[#allocation2 + $0x10] sm:$0xff]
    %v71 = vld [vmem:[#allocation2 + $0x18] sm:$0xff]
    %73 = vset.pattern.permute.xlu0 0
    %74 = vperm.xlu0 %73, %v64
    %v75 = vpop.permute.xlu0 %74
    %v77 = vlaneseq
    %v78 = vshrl.u32 %v77, 7
    %v79 = vsub.s32 2, %v78
    %v80 = vrot.slane %v65, %v79
    %v81 = vmul.f32 %v75, %v80
    %vm82 = vcmask 261120
    %v84 = vsel %vm82, %v67, 0
    %86 = vmatprep.subr.mxu0 0.0
    %87 = vmatpush1.msra.mxu0 %v68
    %88 = vmatprep.subr.mxu0 0.0
    %89 = vmatpush1.msra.mxu0 %v69
    %90 = vmatprep.subr.mxu0 0.0
    %91 = vmatpush1.msra.mxu0 %v70
    %92 = vmatprep.subr.mxu0 0.0
    %93 = vmatpush1.msra.mxu0 %v71
    %94 = vmatprep.subr.mxu0 0.0
    %95 = vmatpush1.msra.mxu0 0.0
    %96 = vmatprep.subr.mxu0 0.0
    %97 = vmatpush1.msra.mxu0 0.0
    %98 = vmatprep.subr.mxu0 0.0
    %99 = vmatpush1.msra.mxu0 0.0
    %100 = vmatprep.subr.mxu0 0.0
    %101 = vmatpush1.msra.mxu0 0.0
    %102 = vmatprep.subr.mxu0 0.0
    %103 = vmatpush1.msra.mxu0 0.0
    %104 = vmatprep.subr.mxu0 0.0
    %105 = vmatpush1.msra.mxu0 0.0
    %106 = vmatprep.subr.mxu0 0.0
    %107 = vmatpush1.msra.mxu0 0.0
    %108 = vmatprep.subr.mxu0 0.0
    %109 = vmatpush1.msra.mxu0 0.0
    %110 = vmatprep.subr.mxu0 0.0
    %111 = vmatpush1.msra.mxu0 0.0
    %112 = vmatprep.subr.mxu0 0.0
    %113 = vmatpush1.msra.mxu0 0.0
    %114 = vmatprep.subr.mxu0 0.0
    %115 = vmatpush1.msra.mxu0 0.0
    %116 = vmatprep.subr.mxu0 0.0
    %117 = vmatpush1.msra.mxu0 0.0
    %118 = vmatprep.subr.mxu0 0.0
    %119 = vmatpush1.msra.mxu0 0.0
    %120 = vmatprep.subr.mxu0 0.0
    %121 = vmatpush1.msra.mxu0 0.0
    %122 = vmatprep.subr.mxu0 0.0
    %123 = vmatpush1.msra.mxu0 0.0
    %124 = vmatprep.subr.mxu0 0.0
    %125 = vmatpush1.msra.mxu0 0.0
    %126 = vmatprep.subr.mxu0 0.0
    %127 = vmatpush1.msra.mxu0 0.0
    %128 = vmatprep.subr.mxu0 0.0
    %129 = vmatpush1.msra.mxu0 0.0
    %130 = vmatprep.subr.mxu0 0.0
    %131 = vmatpush1.msra.mxu0 0.0
    %132 = vmatprep.subr.mxu0 0.0
    %133 = vmatpush1.msra.mxu0 0.0
    %134 = vmatprep.subr.mxu0 0.0
    %135 = vmatpush1.msra.mxu0 0.0
    %136 = vmatprep.subr.mxu0 0.0
    %137 = vmatpush1.msra.mxu0 0.0
    %138 = vmatprep.subr.mxu0 0.0
    %139 = vmatpush1.msra.mxu0 0.0
    %140 = vmatprep.subr.mxu0 0.0
    %141 = vmatpush1.msra.mxu0 0.0
    %142 = vmatprep.subr.mxu0 0.0
    %143 = vmatpush1.msra.mxu0 0.0
    %144 = vmatprep.subr.mxu0 0.0
    %145 = vmatpush1.msra.mxu0 0.0
    %146 = vmatprep.subr.mxu0 0.0
    %147 = vmatpush1.msra.mxu0 0.0
    %148 = vmatprep.subr.mxu0 0.0
    %149 = vmatpush1.msra.mxu0 0.0
    %150 = vmatprep.mubr.f32.mxu0 0.0
    %151 = vmatmul.mubr.f32.gmra.mrb[0].mxu0 %v84
    %v152 = vpop.f32.mrb[0].mxu0
    %v153 = vadd.f32 %v81, %v152
    %v154 = vpop.f32.mrb[0].mxu0
    %155 = vdwg.mxu0
    %156 = vset.pattern.permute.xlu0 1
    %157 = vperm.xlu0 %156, %v64
    %v158 = vpop.permute.xlu0 %157
    %v160 = vlaneseq
    %v161 = vshrl.u32 %v160, 7
    %v162 = vsub.s32 3, %v161
    %v163 = vrot.slane %v65, %v162
    %v164 = vmul.f32 %v158, %v163
    %v165 = vadd.f32 %v153, %v164
    %v166 = vlaneseq
    %v167 = vshrl.u32 %v166, 7
    %v168 = vsub.s32 0, %v167
    %v169 = vrot.slane %v65, %v168
    %v170 = vadd.f32 %v165, %v169
    %v171 = vtanh.pop %v170
    %v172 = vld [vmem:[#allocation5] sm:$0xff]
    %v173 = vld [vmem:[#allocation5 + $0x8] sm:$0xff]
    %v174 = vld [vmem:[#allocation5 + $0x10] sm:$0xff]
    %v175 = vld [vmem:[#allocation5 + $0x18] sm:$0xff]
    %v176 = vld [vmem:[#allocation5 + $0x20] sm:$0xff]
    %v177 = vld [vmem:[#allocation5 + $0x28] sm:$0xff]
    %v178 = vld [vmem:[#allocation5 + $0x30] sm:$0xff]
    %v179 = vld [vmem:[#allocation5 + $0x38] sm:$0xff]
    %v180 = vld [vmem:[#allocation5 + $0x40] sm:$0xff]
    %v181 = vld [vmem:[#allocation5 + $0x48] sm:$0xff]
    %v182 = vld [vmem:[#allocation5 + $0x50] sm:$0xff]
    %v183 = vld [vmem:[#allocation5 + $0x58] sm:$0xff]
    %v184 = vld [vmem:[#allocation5 + $0x60] sm:$0xff]
    %v185 = vld [vmem:[#allocation5 + $0x68] sm:$0xff]
    %v186 = vld [vmem:[#allocation5 + $0x70] sm:$0xff]
    %v187 = vld [vmem:[#allocation5 + $0x78] sm:$0xff]
    %v188 = vld [vmem:[#allocation5 + $0x80] sm:$0xff]
    %v189 = vld [vmem:[#allocation5 + $0x88] sm:$0xff]
    %v190 = vld [vmem:[#allocation5 + $0x90] sm:$0xff]
    %v191 = vld [vmem:[#allocation5 + $0x98] sm:$0xff]
    %v192 = vld [vmem:[#allocation5 + $0xa0] sm:$0xff]
    %v193 = vld [vmem:[#allocation5 + $0xa8] sm:$0xff]
    %v194 = vld [vmem:[#allocation5 + $0xb0] sm:$0xff]
    %v195 = vld [vmem:[#allocation5 + $0xb8] sm:$0xff]
    %v196 = vld [vmem:[#allocation5 + $0xc0] sm:$0xff]
    %v197 = vld [vmem:[#allocation5 + $0xc8] sm:$0xff]
    %v198 = vld [vmem:[#allocation5 + $0xd0] sm:$0xff]
    %v199 = vld [vmem:[#allocation5 + $0xd8] sm:$0xff]
    %v200 = vld [vmem:[#allocation5 + $0xe0] sm:$0xff]
    %v201 = vld [vmem:[#allocation5 + $0xe8] sm:$0xff]
    %v202 = vld [vmem:[#allocation5 + $0xf0] sm:$0xff]
    %v203 = vld [vmem:[#allocation5 + $0xf8] sm:$0xff]
    %v204 = vld [vmem:[#allocation5 + $0x100] sm:$0xff]
    %v205 = vld [vmem:[#allocation5 + $0x108] sm:$0xff]
    %v206 = vld [vmem:[#allocation5 + $0x110] sm:$0xff]
    %v207 = vld [vmem:[#allocation5 + $0x118] sm:$0xff]
    %v208 = vld [vmem:[#allocation5 + $0x120] sm:$0xff]
    %v209 = vld [vmem:[#allocation5 + $0x128] sm:$0xff]
    %v210 = vld [vmem:[#allocation5 + $0x130] sm:$0xff]
    %v211 = vld [vmem:[#allocation5 + $0x138] sm:$0xff]
    %v212 = vld [vmem:[#allocation5 + $0x140] sm:$0xff]
    %v213 = vld [vmem:[#allocation5 + $0x148] sm:$0xff]
    %v214 = vld [vmem:[#allocation5 + $0x150] sm:$0xff]
    %v215 = vld [vmem:[#allocation5 + $0x158] sm:$0xff]
    %v216 = vld [vmem:[#allocation5 + $0x160] sm:$0xff]
    %v217 = vld [vmem:[#allocation5 + $0x168] sm:$0xff]
    %v218 = vld [vmem:[#allocation5 + $0x170] sm:$0xff]
    %v219 = vld [vmem:[#allocation5 + $0x178] sm:$0xff]
    %v220 = vld [vmem:[#allocation5 + $0x180] sm:$0xff]
    %v221 = vld [vmem:[#allocation5 + $0x188] sm:$0xff]
    %v222 = vld [vmem:[#allocation5 + $0x190] sm:$0xff]
    %v223 = vld [vmem:[#allocation5 + $0x198] sm:$0xff]
    %v224 = vld [vmem:[#allocation5 + $0x1a0] sm:$0xff]
    %v225 = vld [vmem:[#allocation5 + $0x1a8] sm:$0xff]
    %v226 = vld [vmem:[#allocation5 + $0x1b0] sm:$0xff]
    %v227 = vld [vmem:[#allocation5 + $0x1b8] sm:$0xff]
    %v228 = vld [vmem:[#allocation5 + $0x1c0] sm:$0xff]
    %v229 = vld [vmem:[#allocation5 + $0x1c8] sm:$0xff]
    %v230 = vld [vmem:[#allocation5 + $0x1d0] sm:$0xff]
    %v231 = vld [vmem:[#allocation5 + $0x1d8] sm:$0xff]
    %v232 = vld [vmem:[#allocation5 + $0x1e0] sm:$0xff]
    %v233 = vld [vmem:[#allocation5 + $0x1e8] sm:$0xff]
    %v234 = vld [vmem:[#allocation5 + $0x1f0] sm:$0xff]
    %v235 = vld [vmem:[#allocation5 + $0x1f8] sm:$0xff]
    %v238 = vlaneseq
    %v239 = vshrl.u32 %v238, 7
    %v240 = vsub.s32 1, %v239
    %v241 = vrot.slane %v65, %v240
    %v242 = vlaneseq
    %v243 = vshrl.u32 %v242, 7
    %v244 = vsub.s32 5, %v243
    %v245 = vrot.slane %v65, %v244
    %v246 = vlaneseq
    %v247 = vshrl.u32 %v246, 7
    %v248 = vsub.s32 1, %v247
    %v249 = vrot.slane %v66, %v248
    %v250 = vlaneseq
    %v251 = vshrl.u32 %v250, 7
    %v252 = vsub.s32 5, %v251
    %v253 = vrot.slane %v66, %v252
    %v258 = vlaneseq
    %v259 = vshrl.u32 %v258, 7
    %v260 = vsub.s32 1, %v259
    %v261 = vrot.slane %v241, %v260
    %v262 = vlaneseq
    %v263 = vshrl.u32 %v262, 7
    %v264 = vsub.s32 1, %v263
    %v265 = vrot.slane %v245, %v264
    %v266 = vlaneseq
    %v267 = vshrl.u32 %v266, 7
    %v268 = vsub.s32 1, %v267
    %v269 = vrot.slane %v249, %v268
    %v270 = vlaneseq
    %v271 = vshrl.u32 %v270, 7
    %v272 = vsub.s32 1, %v271
    %v273 = vrot.slane %v253, %v272
    %274 = vmatprep.subr.mxu0 %v173
    %275 = vmatpush1.msra.mxu0 %v172
    %276 = vmatprep.subr.mxu0 %v177
    %277 = vmatpush1.msra.mxu0 %v176
    %278 = vmatprep.subr.mxu0 %v181
    %279 = vmatpush1.msra.mxu0 %v180
    %280 = vmatprep.subr.mxu0 %v185
    %281 = vmatpush1.msra.mxu0 %v184
    %282 = vmatprep.subr.mxu0 %v189
    %283 = vmatpush1.msra.mxu0 %v188
    %284 = vmatprep.subr.mxu0 %v193
    %285 = vmatpush1.msra.mxu0 %v192
    %286 = vmatprep.subr.mxu0 %v197
    %287 = vmatpush1.msra.mxu0 %v196
    %288 = vmatprep.subr.mxu0 %v201
    %289 = vmatpush1.msra.mxu0 %v200
    %290 = vmatprep.subr.mxu0 %v205
    %291 = vmatpush1.msra.mxu0 %v204
    %292 = vmatprep.subr.mxu0 %v209
    %293 = vmatpush1.msra.mxu0 %v208
    %294 = vmatprep.subr.mxu0 %v213
    %295 = vmatpush1.msra.mxu0 %v212
    %296 = vmatprep.subr.mxu0 %v217
    %297 = vmatpush1.msra.mxu0 %v216
    %298 = vmatprep.subr.mxu0 %v221
    %299 = vmatpush1.msra.mxu0 %v220
    %300 = vmatprep.subr.mxu0 %v225
    %301 = vmatpush1.msra.mxu0 %v224
    %302 = vmatprep.subr.mxu0 %v229
    %303 = vmatpush1.msra.mxu0 %v228
    %304 = vmatprep.subr.mxu0 %v233
    %305 = vmatpush1.msra.mxu0 %v232
    %306 = vmatprep.subr.mxu0 0.0
    %307 = vmatpush1.msra.mxu0 0.0
    %308 = vmatprep.subr.mxu0 0.0
    %309 = vmatpush1.msra.mxu0 0.0
    %310 = vmatprep.subr.mxu0 0.0
    %311 = vmatpush1.msra.mxu0 0.0
    %312 = vmatprep.subr.mxu0 0.0
    %313 = vmatpush1.msra.mxu0 0.0
    %314 = vmatprep.subr.mxu0 0.0
    %315 = vmatpush1.msra.mxu0 0.0
    %316 = vmatprep.subr.mxu0 0.0
    %317 = vmatpush1.msra.mxu0 0.0
    %318 = vmatprep.subr.mxu0 0.0
    %319 = vmatpush1.msra.mxu0 0.0
    %320 = vmatprep.subr.mxu0 0.0
    %321 = vmatpush1.msra.mxu0 0.0
    %322 = vmatprep.subr.mxu0 0.0
    %323 = vmatpush1.msra.mxu0 0.0
    %324 = vmatprep.subr.mxu0 0.0
    %325 = vmatpush1.msra.mxu0 0.0
    %326 = vmatprep.subr.mxu0 0.0
    %327 = vmatpush1.msra.mxu0 0.0
    %328 = vmatprep.subr.mxu0 0.0
    %329 = vmatpush1.msra.mxu0 0.0
    %330 = vmatprep.subr.mxu0 0.0
    %331 = vmatpush1.msra.mxu0 0.0
    %332 = vmatprep.subr.mxu0 0.0
    %333 = vmatpush1.msra.mxu0 0.0
    %334 = vmatprep.subr.mxu0 0.0
    %335 = vmatpush1.msra.mxu0 0.0
    %336 = vmatprep.subr.mxu0 0.0
    %337 = vmatpush1.msra.mxu0 0.0
    %338 = vmatprep.mubr.f32.mxu0 0.0
    %339 = vmatmul.mubr.f32.gmra.mrb[0].mxu0 %v171
    %v340 = vpop.f32.mrb[0].mxu0
    %v341 = vadd.f32 %v261, %v340
    %v342 = vpop.f32.mrb[0].mxu0
    %v343 = vadd.f32 %v265, %v342
    %344 = vdwg.mxu0
    %345 = vmatprep.subr.mxu0 %v175
    %346 = vmatpush1.msra.mxu0 %v174
    %347 = vmatprep.subr.mxu0 %v179
    %348 = vmatpush1.msra.mxu0 %v178
    %349 = vmatprep.subr.mxu0 %v183
    %350 = vmatpush1.msra.mxu0 %v182
    %351 = vmatprep.subr.mxu0 %v187
    %352 = vmatpush1.msra.mxu0 %v186
    %353 = vmatprep.subr.mxu0 %v191
    %354 = vmatpush1.msra.mxu0 %v190
    %355 = vmatprep.subr.mxu0 %v195
    %356 = vmatpush1.msra.mxu0 %v194
    %357 = vmatprep.subr.mxu0 %v199
    %358 = vmatpush1.msra.mxu0 %v198
    %359 = vmatprep.subr.mxu0 %v203
    %360 = vmatpush1.msra.mxu0 %v202
    %361 = vmatprep.subr.mxu0 %v207
    %362 = vmatpush1.msra.mxu0 %v206
    %363 = vmatprep.subr.mxu0 %v211
    %364 = vmatpush1.msra.mxu0 %v210
    %365 = vmatprep.subr.mxu0 %v215
    %366 = vmatpush1.msra.mxu0 %v214
    %367 = vmatprep.subr.mxu0 %v219
    %368 = vmatpush1.msra.mxu0 %v218
    %369 = vmatprep.subr.mxu0 %v223
    %370 = vmatpush1.msra.mxu0 %v222
    %371 = vmatprep.subr.mxu0 %v227
    %372 = vmatpush1.msra.mxu0 %v226
    %373 = vmatprep.subr.mxu0 %v231
    %374 = vmatpush1.msra.mxu0 %v230
    %375 = vmatprep.subr.mxu0 %v235
    %376 = vmatpush1.msra.mxu0 %v234
    %377 = vmatprep.subr.mxu0 0.0
    %378 = vmatpush1.msra.mxu0 0.0
    %379 = vmatprep.subr.mxu0 0.0
    %380 = vmatpush1.msra.mxu0 0.0
    %381 = vmatprep.subr.mxu0 0.0
    %382 = vmatpush1.msra.mxu0 0.0
    %383 = vmatprep.subr.mxu0 0.0
    %384 = vmatpush1.msra.mxu0 0.0
    %385 = vmatprep.subr.mxu0 0.0
    %386 = vmatpush1.msra.mxu0 0.0
    %387 = vmatprep.subr.mxu0 0.0
    %388 = vmatpush1.msra.mxu0 0.0
    %389 = vmatprep.subr.mxu0 0.0
    %390 = vmatpush1.msra.mxu0 0.0
    %391 = vmatprep.subr.mxu0 0.0
    %392 = vmatpush1.msra.mxu0 0.0
    %393 = vmatprep.subr.mxu0 0.0
    %394 = vmatpush1.msra.mxu0 0.0
    %395 = vmatprep.subr.mxu0 0.0
    %396 = vmatpush1.msra.mxu0 0.0
    %397 = vmatprep.subr.mxu0 0.0
    %398 = vmatpush1.msra.mxu0 0.0
    %399 = vmatprep.subr.mxu0 0.0
    %400 = vmatpush1.msra.mxu0 0.0
    %401 = vmatprep.subr.mxu0 0.0
    %402 = vmatpush1.msra.mxu0 0.0
    %403 = vmatprep.subr.mxu0 0.0
    %404 = vmatpush1.msra.mxu0 0.0
    %405 = vmatprep.subr.mxu0 0.0
    %406 = vmatpush1.msra.mxu0 0.0
    %407 = vmatprep.subr.mxu0 0.0
    %408 = vmatpush1.msra.mxu0 0.0
    %409 = vmatprep.mubr.f32.mxu0 0.0
    %410 = vmatmul.mubr.f32.gmra.mrb[0].mxu0 %v171
    %v411 = vpop.f32.mrb[0].mxu0
    %v412 = vadd.f32 %v269, %v411
    %v413 = vpop.f32.mrb[0].mxu0
    %v414 = vadd.f32 %v273, %v413
    %415 = vdwg.mxu0
    %v416 = vadd.f32 %v341, %v343
    %v417 = vadd.f32 %v416, %v412
    %v418 = vadd.f32 %v417, %v414
    %v419 = vmul.f32 %v418, 0.25
    %v420 = vsub.f32 %v341, %v419
    %v421 = vmul.f32 %v420, %v420
    %v422 = vsub.f32 %v343, %v419
    %v423 = vmul.f32 %v422, %v422
    %v424 = vadd.f32 %v421, %v423
    %v425 = vsub.f32 %v412, %v419
    %v426 = vmul.f32 %v425, %v425
    %v427 = vadd.f32 %v424, %v426
    %v428 = vsub.f32 %v414, %v419
    %v429 = vmul.f32 %v428, %v428
    %v430 = vadd.f32 %v427, %v429
    %v431 = vmul.f32 %v430, 0.33333334
    %v432 = vrsqrt.pop %v431
    %v433 = vmul.f32 %v431, %v432
    %vm434 = vcmp.eq.f32.partialorder %v431, inf
    %v435 = vsel %vm434, %v431, %v433
    %vm436 = vcmp.eq.f32.partialorder %v431, 0.0
    %v437 = vand.u32 %v431, 2147483648
    %v438 = vsel %vm436, %v437, %v435
    %vm439 = vcmask 15360
    %v440 = vsel %vm439, %v64, 0.0
    %441 = vst [vmem:[#allocation7] sm:$0xff] %v440
    %442 = vst [vmem:[#allocation7 + $0x8] sm:$0xff] %v419
    %443 = vst [vmem:[#allocation7 + $0x10] sm:$0xff] %v438
    // Predicated region
    $region30: #{tpu_custom_call.1} parent=1 // pred_check
      _
    $region31: #{tpu_custom_call.1} parent=1 // pred_check_branch
      %445 = sbr.rel (0) target = $region33
    $region32: #{tpu_custom_call.1} parent=1 // pred_region
      %s447 = ssub.s32 384, 384
      %448 = vsyncadd [#allocation4], %s447
      %s450 = sshll.u32 [#allocation7], 4
      %s451 = int_to_ptr.vmem [resolvable:$true] %s450
      %453 = dma.vmem_to_hbm [thread:$0]  %s451, 384, %s5, [#allocation4]
    $region33: #{tpu_custom_call.1} parent=1 // pred_fallthru
      _
    // Predicated region
    $region34: #{tpu_custom_call.1} parent=1 // pred_check
      _
    $region35: #{tpu_custom_call.1} parent=1 // pred_check_branch
      %455 = sbr.rel (0) target = $region37
    $region36: #{tpu_custom_call.1} parent=1 // pred_region
      %456 = dma.done [#allocation4], 384
    $region37: #{tpu_custom_call.1} parent=1 // pred_fallthru
      _
    %457 = vsyncpa [#allocation3], 1
    %458 = vsyncpa [#allocation6], 1
    %459 = vsyncpa [#allocation4], 1

</llo_original>
